<compile_context>
chip_gen: v7x
topology: tpu7x:2x2x1
jax: 0.10.0
libtpu: 0.0.40
codegen_flags: <defaults>
</compile_context>

<pallas_src>
import functools
import numpy as np
import jax
import jax.numpy as jnp
from jax import lax
from jax.experimental import pallas as pl
from jax.experimental.pallas import tpu as pltpu


# ------------------------------ VMEM / shape helpers --------------------------

def _default_vmem_limit():
    """Generation-aware scoped-VMEM ceiling: ~half of physical, clamped 32..96 MiB."""
    try:
        phys = int(pltpu.get_tpu_info().vmem_capacity_bytes)
    except Exception:
        return 32 * 1024 * 1024
    return int(max(32 * 1024 * 1024, min(96 * 1024 * 1024, phys // 2)))


_VMEM_LIMIT = _default_vmem_limit()
_EDGE_XLA_MIN = 1024          # below this many edges, per-edge elementwise math goes to XLA


def _round_up(n, m):
    return ((int(n) + m - 1) // m) * m


def _bucket_rows(n, minimum=8):
    """Bucket row counts: pow2 below 4096 (limits Mosaic recompiles), tile-multiple above."""
    n = max(int(n), minimum)
    if n <= 4096:
        return 1 << (n - 1).bit_length()
    return _round_up(n, 1024)


def _row_tile(padded, bytes_per_row, n_bufs, cap=1024):
    """Largest row tile (<= cap) dividing `padded` that fits the double-buffer budget."""
    budget = _VMEM_LIMIT // 2           # leave headroom for resident blocks / pipelining
    t = min(int(padded), cap)
    while t > 8 and (padded % t != 0 or n_bufs * 2 * t * bytes_per_row > budget):
        t //= 2
    return max(t, 8)


def _lane_tile(padded, bytes_per_row, n_bufs, cap=1024):
    """Row tile that is also valid as the last dim of a (1, tile) lane-dense output."""
    t = _row_tile(padded, bytes_per_row, n_bufs, cap)
    if t < padded:
        t = min(max(t, 128), padded)    # padded is pow2 or 1024-multiple -> still divides
    return t


def _col_tile(Cp, cap=512):
    """Channel tile: multiple of 128, divides Cp, capped (keeps blocks small on v7x)."""
    t = min(cap, int(Cp))
    while t > 128 and Cp % t != 0:
        t -= 128
    return t


def _pad2d(a, rows, cols):
    a = jnp.asarray(a, jnp.float32)
    return jnp.pad(a, ((0, rows - a.shape[0]), (0, cols - a.shape[1])))


def _pad_lane(v, lanes):
    """(n,) -> lane-dense (1, lanes) f32, zero padded."""
    v = jnp.asarray(v, jnp.float32).reshape(-1)
    return jnp.pad(v, (0, lanes - v.shape[0])).reshape(1, lanes)


# ----------------------------- Pallas kernels --------------------------------

def _att_score_lin_kernel(x_ref, wt_ref, b_ref, att_ref, s_ref):
    """s[n] = leaky_relu(x[n] @ W^T + b, 0.2) . (att_l + att_r); lane-dense (1, TN) out."""
    h = jnp.dot(x_ref[...], wt_ref[...], preferred_element_type=jnp.float32) + b_ref[...]
    h = jnp.where(h >= 0.0, h, 0.2 * h)            # leaky_relu(0.2), as in the reference
    s_ref[...] = lax.dot_general(
        att_ref[...], h, dimension_numbers=(((1,), (1,)), ((), ())),
        preferred_element_type=jnp.float32)        # (1, TN), lane-dense store


def _att_score_nolin_kernel(x_ref, att_ref, s_ref):
    s_ref[...] = lax.dot_general(
        att_ref[...], x_ref[...], dimension_numbers=(((1,), (1,)), ((), ())),
        preferred_element_type=jnp.float32)


def _edge_sigmoid_kernel(ssrc_ref, sdst_ref, out_ref):
    out_ref[...] = jax.nn.sigmoid(ssrc_ref[...] + sdst_ref[...])


def _edge_sigmoid_avg_kernel(ssrc_ref, sdst_ref, ew_ref, out_ref):
    out_ref[...] = (jax.nn.sigmoid(ssrc_ref[...] + sdst_ref[...]) + ew_ref[...]) * 0.5


def _featdiff_kernel(xs_ref, xd_ref, out_ref, *, inv_wei):
    d = xs_ref[...] - xd_ref[...]
    sq = d * d
    ones = jnp.ones((1, sq.shape[1]), jnp.float32)
    dist = lax.dot_general(ones, sq, dimension_numbers=(((1,), (1,)), ((), ())),
                           preferred_element_type=jnp.float32)   # (1, TE) lane-dense
    out_ref[...] = jnp.exp(dist * (-inv_wei))


def _featdiff_mul_kernel(xs_ref, xd_ref, ew_ref, out_ref, *, inv_wei):
    d = xs_ref[...] - xd_ref[...]
    sq = d * d
    ones = jnp.ones((1, sq.shape[1]), jnp.float32)
    dist = lax.dot_general(ones, sq, dimension_numbers=(((1,), (1,)), ((), ())),
                           preferred_element_type=jnp.float32)
    out_ref[...] = ew_ref[...] * jnp.exp(dist * (-inv_wei))


def _pair_max_kernel(a_ref, b_ref, o_ref):
    """Graclus segment-max as an elementwise pair reduction (tiled, fully vectorized)."""
    o_ref[...] = jnp.maximum(a_ref[...], b_ref[...])


def _pair_mean_kernel(a_ref, b_ref, o_ref):
    """Graclus segment-mean: m1 == m0 for singleton clusters, so (a+b)/2 is exact."""
    o_ref[...] = (a_ref[...] + b_ref[...]) * 0.5


# ----------------------------- kernel wrappers --------------------------------

def _node_att_scores(x, wt_p, b_p, att_p, use_linear):
    """x: (N, C) -> per-node attention scores (N,) computed in a tiled Pallas kernel."""
    N = int(x.shape[0])
    Cp = int(att_p.shape[1])
    Np = _bucket_rows(N)
    tn = _lane_tile(Np, Cp * 4, 2)
    x_p = _pad2d(x, Np, Cp)
    grid = (Np // tn,)
    cp = pltpu.CompilerParams(dimension_semantics=("parallel",),
                              vmem_limit_bytes=_VMEM_LIMIT)
    out_shape = jax.ShapeDtypeStruct((1, Np), jnp.float32)
    out_spec = pl.BlockSpec((1, tn), lambda i: (0, i))
    x_spec = pl.BlockSpec((tn, Cp), lambda i: (i, 0))

    def full(r, c):
        return pl.BlockSpec((r, c), lambda i: (0, 0))

    if use_linear:
        out = pl.pallas_call(
            _att_score_lin_kernel, out_shape=out_shape,
            grid_spec=pltpu.PrefetchScalarGridSpec(
                num_scalar_prefetch=0, grid=grid,
                in_specs=[x_spec, full(Cp, Cp), full(1, Cp), full(1, Cp)],
                out_specs=out_spec),
            compiler_params=cp,
        )(x_p, wt_p, b_p, att_p)
    else:
        out = pl.pallas_call(
            _att_score_nolin_kernel, out_shape=out_shape,
            grid_spec=pltpu.PrefetchScalarGridSpec(
                num_scalar_prefetch=0, grid=grid,
                in_specs=[x_spec, full(1, Cp)],
                out_specs=out_spec),
            compiler_params=cp,
        )(x_p, att_p)
    return out[0, :N]


def _edge_att_weights(s_src, s_dst, ew=None):
    """sigmoid(s[src]+s[dst]) (optionally averaged with ew).

    Tiny E -> plain XLA (a pallas_call launch would cost more than the math).
    Large E -> 2D lane-dense (rows, 128) tiles for full vreg occupancy.
    """
    E = int(s_src.shape[0])
    if E < _EDGE_XLA_MIN:
        w = jax.nn.sigmoid(jnp.asarray(s_src, jnp.float32) + jnp.asarray(s_dst, jnp.float32))
        return w if ew is None else (w + jnp.asarray(ew, jnp.float32)) * 0.5

    Rp = _bucket_rows((E + 127) // 128)
    Ep = Rp * 128

    def to2d(v):
        v = jnp.asarray(v, jnp.float32).reshape(-1)
        return jnp.pad(v, (0, Ep - E)).reshape(Rp, 128)

    n_bufs = 3 if ew is None else 4              # inputs + output
    tr = _row_tile(Rp, 128 * 4, n_bufs)
    grid = (Rp // tr,)
    spec = pl.BlockSpec((tr, 128), lambda i: (i, 0))
    cp = pltpu.CompilerParams(dimension_semantics=("parallel",),
                              vmem_limit_bytes=_VMEM_LIMIT)
    if ew is None:
        out = pl.pallas_call(
            _edge_sigmoid_kernel,
            out_shape=jax.ShapeDtypeStruct((Rp, 128), jnp.float32),
            grid_spec=pltpu.PrefetchScalarGridSpec(
                num_scalar_prefetch=0, grid=grid,
                in_specs=[spec, spec], out_specs=spec),
            compiler_params=cp,
        )(to2d(s_src), to2d(s_dst))
    else:
        out = pl.pallas_call(
            _edge_sigmoid_avg_kernel,
            out_shape=jax.ShapeDtypeStruct((Rp, 128), jnp.float32),
            grid_spec=pltpu.PrefetchScalarGridSpec(
                num_scalar_prefetch=0, grid=grid,
                in_specs=[spec, spec, spec], out_specs=spec),
            compiler_params=cp,
        )(to2d(s_src), to2d(s_dst), to2d(ew))
    return out.reshape(-1)[:E]


def _edge_featdiff_weights(xs, xd, inv_wei, ew=None):
    """exp(-||x[src]-x[dst]||^2 / wei) (optionally * ew), tiled over edges."""
    E, C = xs.shape
    Ep = _bucket_rows(E)
    Cp = _round_up(C, 128)
    te = _lane_tile(Ep, Cp * 4, 2)               # two (te, Cp) inputs dominate VMEM
    grid = (Ep // te,)
    xspec = pl.BlockSpec((te, Cp), lambda i: (i, 0))
    espec = pl.BlockSpec((1, te), lambda i: (0, i))
    cp = pltpu.CompilerParams(dimension_semantics=("parallel",),
                              vmem_limit_bytes=_VMEM_LIMIT)
    xs_p = _pad2d(xs, Ep, Cp)
    xd_p = _pad2d(xd, Ep, Cp)
    if ew is None:
        out = pl.pallas_call(
            functools.partial(_featdiff_kernel, inv_wei=inv_wei),
            out_shape=jax.ShapeDtypeStruct((1, Ep), jnp.float32),
            grid_spec=pltpu.PrefetchScalarGridSpec(
                num_scalar_prefetch=0, grid=grid,
                in_specs=[xspec, xspec], out_specs=espec),
            compiler_params=cp,
        )(xs_p, xd_p)
    else:
        out = pl.pallas_call(
            functools.partial(_featdiff_mul_kernel, inv_wei=inv_wei),
            out_shape=jax.ShapeDtypeStruct((1, Ep), jnp.float32),
            grid_spec=pltpu.PrefetchScalarGridSpec(
                num_scalar_prefetch=0, grid=grid,
                in_specs=[xspec, xspec, espec], out_specs=espec),
            compiler_params=cp,
        )(xs_p, xd_p, _pad_lane(ew, Ep))
    return out[0, :E]


def _cluster_pair_indices(cluster, num_clusters):
    """Host-side: per-cluster (member0, member1) indices; member1 == member0 for singletons."""
    cluster = np.asarray(cluster, np.int64)
    counts = np.bincount(cluster, minlength=num_clusters)
    assert counts.max() <= 2, "graclus pair pooling requires <=2 members per cluster"
    order = np.argsort(cluster, kind="stable")
    sc = cluster[order]
    first = np.ones(order.shape[0], dtype=bool)
    first[1:] = sc[1:] != sc[:-1]
    m0 = np.zeros(num_clusters, np.int64)
    m0[sc[first]] = order[first]
    m1 = m0.copy()
    m1[sc[~first]] = order[~first]
    return m0, m1


def pair_pool(x, cluster, num_clusters, reduce):
    """Segment mean/max of x (N, C) into (num_clusters, C).

    Graclus clusters have <=2 members, so this is a host-built pair permutation
    followed by a vectorized (8,128)-tiled elementwise Pallas kernel — no serial
    scatter, no dynamic addressing, no resident accumulator.
    """
    x = jnp.asarray(x, jnp.float32)
    N, C = x.shape
    m0, m1 = _cluster_pair_indices(cluster, num_clusters)
    # TODO(synk): member-row gathers are XLA takes; an in-kernel DMA gather would avoid
    # materializing the two (K, C) slabs in HBM.
    a = jnp.take(x, jnp.asarray(m0, jnp.int32), axis=0)
    b = jnp.take(x, jnp.asarray(m1, jnp.int32), axis=0)

    Kp = _bucket_rows(num_clusters)
    Cp = _round_up(C, 128)
    a_p = _pad2d(a, Kp, Cp)
    b_p = _pad2d(b, Kp, Cp)

    tc = _col_tile(Cp)                       # channel tiling keeps blocks small on v7x
    tk = _row_tile(Kp, tc * 4, 3)            # 2 inputs + 1 output, double-buffered
    grid = (Kp // tk, Cp // tc)
    spec = pl.BlockSpec((tk, tc), lambda i, j: (i, j))
    kern = _pair_max_kernel if reduce == "max" else _pair_mean_kernel
    out = pl.pallas_call(
        kern,
        out_shape=jax.ShapeDtypeStruct((Kp, Cp), jnp.float32),
        grid_spec=pltpu.PrefetchScalarGridSpec(
            num_scalar_prefetch=0, grid=grid,
            in_specs=[spec, spec], out_specs=spec),
        compiler_params=pltpu.CompilerParams(
            dimension_semantics=("parallel", "parallel"),   # pure elementwise -> both TCs
            vmem_limit_bytes=_VMEM_LIMIT),
    )(a_p, b_p)
    return out[:num_clusters, :C]


# ------------------------------ host-side glue --------------------------------

# TODO(synk): graclus greedy heavy-edge matching is inherently sequential and
# data-dependent; it has no clean Pallas equivalent and runs on host (numpy).
def graclus_numpy(edge_index, edge_weight, num_nodes):
    src = np.asarray(edge_index[0]); dst = np.asarray(edge_index[1])
    w = np.ones(src.shape[0], np.float64) if edge_weight is None \
        else np.asarray(edge_weight, np.float64)
    nbrs = [[] for _ in range(num_nodes)]
    for e in range(src.shape[0]):
        nbrs[int(src[e])].append((int(dst[e]), float(w[e])))
    cluster = -np.ones(num_nodes, dtype=np.int64)
    next_id = 0
    for u in range(num_nodes):                     # deterministic node order
        if cluster[u] != -1:
            continue
        best, best_w = -1, -np.inf
        for v, wv in nbrs[u]:
            if v != u and cluster[v] == -1 and wv > best_w:
                best, best_w = v, wv
        cluster[u] = next_id
        if best != -1:
            cluster[best] = next_id
        next_id += 1
    return cluster


def consecutive_cluster_numpy(cluster):
    _, inv = np.unique(np.asarray(cluster), return_inverse=True)
    return inv.astype(np.int64)


def pool_edge_numpy(cluster, edge_index, edge_attr=None):
    """pool_edge: map edges through cluster ids, drop self loops, coalesce(op='mean')."""
    cluster = np.asarray(cluster)
    ei = cluster[np.asarray(edge_index).reshape(-1)].reshape(2, -1)
    ea = None if edge_attr is None else np.asarray(edge_attr, np.float64)
    mask = ei[0] != ei[1]                          # remove_self_loops
    ei = ei[:, mask]
    ea = None if ea is None else ea[mask]
    if ei.size > 0:                                # coalesce duplicates (mean)
        base = int(cluster.max()) + 1
        key = ei[0] * base + ei[1]
        uniq, inv = np.unique(key, return_inverse=True)
        new_ei = np.stack([uniq // base, uniq % base]).astype(np.int64)
        if ea is not None:
            sums = np.zeros(uniq.shape[0], np.float64)
            cnts = np.zeros(uniq.shape[0], np.float64)
            np.add.at(sums, inv, ea)
            np.add.at(cnts, inv, 1.0)
            ea = (sums / cnts).astype(np.float32)
        ei = new_ei
    return ei, ea


def pool_face_numpy(cluster, fv_indices):
    cluster = np.asarray(cluster)
    face = cluster[np.asarray(fv_indices).reshape(-1)].reshape(-1, 3)
    bad = (face[:, 0] == face[:, 1]) | (face[:, 0] == face[:, 2]) | (face[:, 1] == face[:, 2])
    return face[~bad]


# -------------------------------- PoolingLayer --------------------------------

class PoolingLayerPallas:
    def __init__(self, in_channel, pool_type='max', pool_step=2,
                 edge_weight_type=0, wei_param=2, key=None):
        assert pool_type in ['max', 'mean']
        self.pool_type = pool_type
        self.pool_step = pool_step
        self.edge_weight_type = edge_weight_type
        self.wei_param = wei_param
        self.unpooling_indices = None

        if key is None:
            key = jax.random.PRNGKey(0)
        kw, kb, kl, kr = jax.random.split(key, 4)
        C = in_channel
        Cp = _round_up(C, 128)
        self._C = C
        self._Cp = Cp
        # Deterministic synthetic parameters (same shapes as the torch module).
        if edge_weight_type in (4, 5):
            bound = float(np.sqrt(6.0 / (C + C)))
            lin_w = jax.random.uniform(kw, (C, C), jnp.float32, -bound, bound)
            lin_b = jax.random.uniform(kb, (1, C), jnp.float32, -bound, bound)
        else:
            lin_w = jnp.zeros((C, C), jnp.float32)
            lin_b = jnp.zeros((1, C), jnp.float32)
        if edge_weight_type in (3, 4, 5):
            bound = float(1.414 * np.sqrt(6.0 / (C + 1)))   # xavier_uniform, gain=1.414
            att_l = jax.random.uniform(kl, (1, C), jnp.float32, -bound, bound)
            att_r = jax.random.uniform(kr, (1, C), jnp.float32, -bound, bound)
        else:
            att_l = jnp.zeros((1, C), jnp.float32)
            att_r = jnp.zeros((1, C), jnp.float32)
        self.lin_w, self.lin_b = lin_w, lin_b
        self.att_l, self.att_r = att_l, att_r
        # Pre-transposed / pre-padded device params (no in-kernel transpose).
        # (al+ar fusion is exact: the reference's alpha_l+alpha_r == (a0+a1)[src]+(a0+a1)[dst].)
        self._wt_p = _pad2d(lin_w.T, Cp, Cp)
        self._b_p = _pad2d(lin_b, 1, Cp)
        self._att_p = _pad2d(att_l + att_r, 1, Cp)

    def _get_edge_weight(self, x, edge_index, edge_weight):
        ei = np.asarray(edge_index)
        mask = ei[0] != ei[1]                       # remove_self_loops
        ei = ei[:, mask]
        ew = None if edge_weight is None else \
            jnp.asarray(edge_weight, jnp.float32)[np.asarray(mask)]
        if ei.size == 0:
            return ei, ew, None
        t = self.edge_weight_type
        src = jnp.asarray(ei[0], jnp.int32)
        dst = jnp.asarray(ei[1], jnp.int32)
        if t == -1:
            out = None
        elif t == 0:
            out = ew
        elif t in (1, 2):
            # TODO(synk): edge-endpoint row gather delegated to XLA take (O(E*C));
            # the squared-diff + exp hot path runs in the tiled Pallas kernel.
            xs = jnp.take(x, src, axis=0)
            xd = jnp.take(x, dst, axis=0)
            out = _edge_featdiff_weights(xs, xd, 1.0 / float(self.wei_param),
                                         ew if t == 2 else None)
        elif t in (3, 4, 5):
            if t == 5 and ew is None:
                raise ValueError("edge_weight_type=5 requires an input edge_weight")
            s = _node_att_scores(x, self._wt_p, self._b_p, self._att_p,
                                 use_linear=(t in (4, 5)))
            s_src = jnp.take(s, src)
            s_dst = jnp.take(s, dst)
            out = _edge_att_weights(s_src, s_dst, ew if t == 5 else None)
        else:
            # TODO(synk): edge_weight_type 6-10 (min/max renormalisation variants) not implemented.
            raise NotImplementedError(f"edge_weight_type={t}")
        return ei, ew, out

    def forward(self, x, edge_index, edge_weight=None, pos=None,
                edge_dual=None, fv_indices=None):
        x = jnp.asarray(x, jnp.float32)
        edge_index, _val, edge_weight = self._get_edge_weight(x, edge_index, edge_weight)
        pos = None if pos is None else jnp.asarray(pos, jnp.float32)
        face = None if fv_indices is None else np.asarray(fv_indices)
        edge_dual = None if edge_dual is None else np.asarray(edge_dual)

        clusts = []
        for _ in range(self.pool_step):
            ew_host = None if edge_weight is None else np.asarray(edge_weight)
            cluster = graclus_numpy(edge_index, ew_host, int(x.shape[0]))
            cluster = consecutive_cluster_numpy(cluster)
            clusts.append(cluster)
            K = int(cluster.max()) + 1
            x = pair_pool(x, cluster, K, self.pool_type)                        # Pallas pooling
            edge_index, edge_weight = pool_edge_numpy(cluster, edge_index, ew_host)
            pos = None if pos is None else pair_pool(pos, cluster, K, "mean")   # pool_pos
            edge_dual = None if edge_dual is None else cluster[edge_dual]
            if edge_index.size == 0:
                break

        clust = clusts[-1]
        for c in clusts[-2::-1]:
            clust = clust[c]
        self.unpooling_indices = jnp.asarray(clust)

        return {
            "x": x,
            "edge_index": jnp.asarray(edge_index),
            "edge_weight": None if edge_weight is None else jnp.asarray(edge_weight, jnp.float32),
            "pos": pos,
            "edge_dual": None if edge_dual is None else jnp.asarray(edge_dual),
            "fv_indices": None if face is None else jnp.asarray(face),
        }

    def unpooling(self, x):
        if self.unpooling_indices is not None:
            x = x[self.unpooling_indices]
        return x


# ------------------------------------ main -------------------------------------

if __name__ == "__main__":
    key = jax.random.PRNGKey(0)
    k_x, k_pos, k_w, k_param = jax.random.split(key, 4)

    N, C = 16, 32
    x = jax.random.normal(k_x, (N, C), jnp.float32)
    pos = jax.random.normal(k_pos, (N, 3), jnp.float32)

    # Ring graph, both directions (32 directed edges).
    src = np.arange(N)
    dst = (src + 1) % N
    edge_index = np.stack([np.concatenate([src, dst]),
                           np.concatenate([dst, src])]).astype(np.int64)
    E = edge_index.shape[1]
    edge_weight = jax.random.uniform(k_w, (E,), jnp.float32)

    # type 4: linear + attention edge weights, max pooling, two pool steps.
    layer = PoolingLayerPallas(in_channel=C, pool_type='max', pool_step=2,
                               edge_weight_type=4, wei_param=2, key=k_param)
    out = layer.forward(x, edge_index, edge_weight, pos)
    jax.block_until_ready(out["x"])
    _ = jax.block_until_ready(layer.unpooling(out["x"]))

    # type 1: feature-diff edge weights, mean pooling, one pool step.
    layer2 = PoolingLayerPallas(in_channel=C, pool_type='mean', pool_step=1,
                                edge_weight_type=1, wei_param=2, key=k_param)
    out2 = layer2.forward(x, edge_index, edge_weight, pos)
    jax.block_until_ready(out2["x"])

    # type 3: attention without linear, max pooling.
    layer3 = PoolingLayerPallas(in_channel=C, pool_type='max', pool_step=1,
                                edge_weight_type=3, wei_param=2, key=k_param)
    jax.block_until_ready(layer3.forward(x, edge_index, edge_weight, pos)["x"])

    # type 2: feature-diff * input weight, mean pooling.
    layer4 = PoolingLayerPallas(in_channel=C, pool_type='mean', pool_step=1,
                                edge_weight_type=2, wei_param=2, key=k_param)
    jax.block_until_ready(layer4.forward(x, edge_index, edge_weight, pos)["x"])

    # Smoke-test the large-E lane-dense edge-sigmoid Pallas path (the demo graphs above
    # use the small-E XLA fallback per the perf guidance).
    s_big = jax.random.normal(jax.random.PRNGKey(1), (2, 2048), jnp.float32)
    w_big = _edge_att_weights(s_big[0], s_big[1])
    w_big2 = _edge_att_weights(s_big[0], s_big[1], ew=w_big)
    jax.block_until_ready((w_big, w_big2))

    print("KERNEL_OK")
</pallas_src>

<mosaic_0001>
module attributes {stable_mosaic.version = 11 : i64} {
  func.func @_att_score_lin_kernel(%arg0: i32, %arg1: memref<16x128xf32, #tpu.memory_space<vmem>>, %arg2: memref<128x128xf32, #tpu.memory_space<vmem>>, %arg3: memref<1x128xf32, #tpu.memory_space<vmem>>, %arg4: memref<1x128xf32, #tpu.memory_space<vmem>>, %arg5: memref<1x16xf32, #tpu.memory_space<vmem>>) attributes {dimension_semantics = [#tpu.dimension_semantics<parallel>], iteration_bounds = array<i64: 1>, scalar_prefetch = 0 : i64, scratch_operands = 0 : i64, tpu.core_type = #tpu.core_type<tc>, window_params = [{transform_indices = @transform_0, window_bounds = array<i64: 16, 128>}, {pipeline_mode = #tpu.pipeline_mode<synchronous>, transform_indices = @transform_1, window_bounds = array<i64: 128, 128>}, {pipeline_mode = #tpu.pipeline_mode<synchronous>, transform_indices = @transform_2, window_bounds = array<i64: 1, 128>}, {pipeline_mode = #tpu.pipeline_mode<synchronous>, transform_indices = @transform_3, window_bounds = array<i64: 1, 128>}, {transform_indices = @transform_4, window_bounds = array<i64: 1, 16>}]} {
    %c0 = arith.constant 0 : index
    %c0_0 = arith.constant 0 : index
    %0 = vector.load %arg1[%c0, %c0_0] : memref<16x128xf32, #tpu.memory_space<vmem>>, vector<16x128xf32>
    %c0_1 = arith.constant 0 : index
    %c0_2 = arith.constant 0 : index
    %1 = vector.load %arg2[%c0_1, %c0_2] : memref<128x128xf32, #tpu.memory_space<vmem>>, vector<128x128xf32>
    %cst = arith.constant dense<0.000000e+00> : vector<16x128xf32>
    %2 = tpu.matmul %0, %1, %cst {dimension_numbers = #tpu.dot_dimension_numbers<[1], [0], [0], [1], [0, 0, 1, 1], [], []>} : vector<16x128xf32>, vector<128x128xf32>, vector<16x128xf32> -> vector<16x128xf32>
    %c0_3 = arith.constant 0 : index
    %c0_4 = arith.constant 0 : index
    %3 = vector.load %arg3[%c0_3, %c0_4] : memref<1x128xf32, #tpu.memory_space<vmem>>, vector<1x128xf32>
    %4 = vector.broadcast %3 : vector<1x128xf32> to vector<16x128xf32>
    %5 = arith.addf %2, %4 : vector<16x128xf32>
    %cst_5 = arith.constant 0.000000e+00 : f32
    %6 = vector.broadcast %cst_5 : f32 to vector<16x128xf32>
    %7 = arith.cmpf oge, %5, %6 : vector<16x128xf32>
    %cst_6 = arith.constant 2.000000e-01 : f32
    %8 = vector.broadcast %cst_6 : f32 to vector<16x128xf32>
    %9 = arith.mulf %8, %5 : vector<16x128xf32>
    %10 = arith.select %7, %5, %9 : vector<16x128xi1>, vector<16x128xf32>
    %c0_7 = arith.constant 0 : index
    %c0_8 = arith.constant 0 : index
    %11 = vector.load %arg4[%c0_7, %c0_8] : memref<1x128xf32, #tpu.memory_space<vmem>>, vector<1x128xf32>
    %cst_9 = arith.constant dense<0.000000e+00> : vector<1x16xf32>
    %12 = tpu.matmul %11, %10, %cst_9 {dimension_numbers = #tpu.dot_dimension_numbers<[1], [1], [0], [0], [0, 0, 1, 0], [], []>} : vector<1x128xf32>, vector<16x128xf32>, vector<1x16xf32> -> vector<1x16xf32>
    %c0_10 = arith.constant 0 : index
    %c0_11 = arith.constant 0 : index
    %13 = vector.load %arg5[%c0_10, %c0_11] : memref<1x16xf32, #tpu.memory_space<vmem>>, vector<1x16xf32>
    tpu.vector_store %arg5[%c0_10, %c0_11], %12 {strides = array<i32>} : memref<1x16xf32, #tpu.memory_space<vmem>>, vector<1x16xf32>,
    return
  }
  func.func @transform_0(%arg0: i32) -> (i32, i32) {
    %c0_i32 = arith.constant 0 : i32
    %c0_i32_0 = arith.constant 0 : i32
    return %arg0, %c0_i32 : i32, i32
  }
  func.func @transform_1(%arg0: i32) -> (i32, i32) {
    %c0_i32 = arith.constant 0 : i32
    %c0_i32_0 = arith.constant 0 : i32
    %c0_i32_1 = arith.constant 0 : i32
    return %c0_i32, %c0_i32_0 : i32, i32
  }
  func.func @transform_2(%arg0: i32) -> (i32, i32) {
    %c0_i32 = arith.constant 0 : i32
    %c0_i32_0 = arith.constant 0 : i32
    %c0_i32_1 = arith.constant 0 : i32
    return %c0_i32, %c0_i32_0 : i32, i32
  }
  func.func @transform_3(%arg0: i32) -> (i32, i32) {
    %c0_i32 = arith.constant 0 : i32
    %c0_i32_0 = arith.constant 0 : i32
    %c0_i32_1 = arith.constant 0 : i32
    return %c0_i32, %c0_i32_0 : i32, i32
  }
  func.func @transform_4(%arg0: i32) -> (i32, i32) {
    %c0_i32 = arith.constant 0 : i32
    %c0_i32_0 = arith.constant 0 : i32
    return %c0_i32, %arg0 : i32, i32
  }
}

</mosaic_0001>

<llo_original>
// kernel: tpu_custom_call.1
$region0: #{tpu_custom_call.1}
  #allocation0 [shape = 'u32[]', space=smem, size = 0x4, offset = 0x4, fixed_abs, tag = 'smem constant byte address 0x4 - core index']
  #allocation1 [shape = 'u32[144,128]{1,0:T(1,128)}', space=vmem, size = 0x12000, scoped, tag = 'internal scratch']
  %s0 = inlined_call_operand.hbm [shape: f32[16,128], index: 0, kind: input, shape index: {}]
  %s1 = inlined_call_operand.hbm [shape: f32[128,128], index: 1, kind: input, shape index: {}]
  %s2 = inlined_call_operand.vmem [shape: f32[1,128], index: 2, kind: input, shape index: {}]
  %s3 = inlined_call_operand.vmem [shape: f32[1,128], index: 3, kind: input, shape index: {}]
  %s4 = inlined_call_operand.hbm [shape: f32[1,16], index: 4, kind: output, shape index: {}]
  %s5 = sld [smem:[#allocation0]]
  $region34: #{tpu_custom_call.1} parent=0
    _
  %s7 = ssub.s32 1, %s5
  %s8 = scalar_select 0, %s7, %s5
  $region1: #{tpu_custom_call.1} parent=0
    #allocation2 [shape = 'u8[8192]{0}', space=vmem, size = 0x2000, scoped, tag = 'input window, operand 0, single buffered']
    #allocation3 [shape = 's32[1]{0}', space=sflag, size = 0x4, scoped, tag = 'scoped memory for tpu_custom_call.1']
    #allocation4 [shape = 's32[1]{0}', space=sflag, size = 0x4, scoped, tag = 'scoped memory for tpu_custom_call.1']
    #allocation5 [shape = 'u8[65536]{0}', space=vmem, size = 0x10000, scoped, tag = 'input window, operand 1, single buffered']
    #allocation6 [shape = 's32[1]{0}', space=sflag, size = 0x4, scoped, tag = 'scoped memory for tpu_custom_call.1']
    #allocation7 [shape = 'u8[512]{0}', space=vmem, size = 0x400, scoped, tag = 'output window, operand 0, single buffered']
    %9 = vsyncpa [#allocation3], 0
    %10 = vsyncpa [#allocation6], 0
    %11 = vsyncpa [#allocation4], 0
    // Predicated region
    $region2: #{tpu_custom_call.1} parent=1 // pred_check
      _
    $region3: #{tpu_custom_call.1} parent=1 // pred_check_branch
      %13 = sbr.rel (0) target = $region5
    $region4: #{tpu_custom_call.1} parent=1 // pred_region
      %s15 = ssub.s32 256, 256
      %16 = vsyncadd [#allocation3], %s15
      %s17 = sshll.u32 [#allocation2], 4
      %s18 = int_to_ptr.vmem [resolvable:$true] %s17
      %23 = dma.hbm_to_vmem [thread:$0]  %s0, 256, %s18, [#allocation3], 128, 128, 8
    $region5: #{tpu_custom_call.1} parent=1 // pred_fallthru
      _
    // Predicated region
    $region6: #{tpu_custom_call.1} parent=1 // pred_check
      _
    $region7: #{tpu_custom_call.1} parent=1 // pred_check_branch
      %25 = sbr.rel (0) target = $region9
    $region8: #{tpu_custom_call.1} parent=1 // pred_region
      %s27 = ssub.s32 2048, 2048
      %28 = vsyncadd [#allocation6], %s27
      %s29 = sshll.u32 [#allocation5], 4
      %s30 = int_to_ptr.vmem [resolvable:$true] %s29
      %35 = dma.hbm_to_vmem [thread:$0]  %s1, 2048, %s30, [#allocation6], 128, 128, 8
    $region9: #{tpu_custom_call.1} parent=1 // pred_fallthru
      _
    // Predicated region
    $region10: #{tpu_custom_call.1} parent=1 // pred_check
      _
    $region11: #{tpu_custom_call.1} parent=1 // pred_check_branch
      %37 = sbr.rel (0) target = $region13
    $region12: #{tpu_custom_call.1} parent=1 // pred_region
      _
    $region13: #{tpu_custom_call.1} parent=1 // pred_fallthru
      _
    // Predicated region
    $region14: #{tpu_custom_call.1} parent=1 // pred_check
      _
    $region15: #{tpu_custom_call.1} parent=1 // pred_check_branch
      %39 = sbr.rel (0) target = $region17
    $region16: #{tpu_custom_call.1} parent=1 // pred_region
      _
    $region17: #{tpu_custom_call.1} parent=1 // pred_fallthru
      _
    // Predicated region
    $region18: #{tpu_custom_call.1} parent=1 // pred_check
      _
    $region19: #{tpu_custom_call.1} parent=1 // pred_check_branch
      %41 = sbr.rel (0) target = $region21
    $region20: #{tpu_custom_call.1} parent=1 // pred_region
      %42 = dma.done [#allocation3], 256
    $region21: #{tpu_custom_call.1} parent=1 // pred_fallthru
      _
    // Predicated region
    $region22: #{tpu_custom_call.1} parent=1 // pred_check
      _
    $region23: #{tpu_custom_call.1} parent=1 // pred_check_branch
      %44 = sbr.rel (0) target = $region25
    $region24: #{tpu_custom_call.1} parent=1 // pred_region
      %45 = dma.done [#allocation6], 2048
    $region25: #{tpu_custom_call.1} parent=1 // pred_fallthru
      _
    %v46 = vld [vmem:[#allocation2] sm:$0xff]
    %v47 = vld [vmem:[#allocation2 + $0x8] sm:$0xff]
    %v48 = vld [vmem:[#allocation5] sm:$0xff]
    %v49 = vld [vmem:[#allocation5 + $0x8] sm:$0xff]
    %v50 = vld [vmem:[#allocation5 + $0x10] sm:$0xff]
    %v51 = vld [vmem:[#allocation5 + $0x18] sm:$0xff]
    %v52 = vld [vmem:[#allocation5 + $0x20] sm:$0xff]
    %v53 = vld [vmem:[#allocation5 + $0x28] sm:$0xff]
    %v54 = vld [vmem:[#allocation5 + $0x30] sm:$0xff]
    %v55 = vld [vmem:[#allocation5 + $0x38] sm:$0xff]
    %v56 = vld [vmem:[#allocation5 + $0x40] sm:$0xff]
    %v57 = vld [vmem:[#allocation5 + $0x48] sm:$0xff]
    %v58 = vld [vmem:[#allocation5 + $0x50] sm:$0xff]
    %v59 = vld [vmem:[#allocation5 + $0x58] sm:$0xff]
    %v60 = vld [vmem:[#allocation5 + $0x60] sm:$0xff]
    %v61 = vld [vmem:[#allocation5 + $0x68] sm:$0xff]
    %v62 = vld [vmem:[#allocation5 + $0x70] sm:$0xff]
    %v63 = vld [vmem:[#allocation5 + $0x78] sm:$0xff]
    %v64 = vld [vmem:[%s2] sm:$0x1]
    %v66 = vlaneseq
    %v67 = vshrl.u32 %v66, 7
    %v68 = vsub.s32 0, %v67
    %v69 = vrot.slane %v64, %v68
    %71 = vmatprep.subr.mxu0 0.0
    %72 = vmatpush1.msra.mxu0 %v48
    %73 = vmatprep.subr.mxu0 0.0
    %74 = vmatpush1.msra.mxu0 %v49
    %75 = vmatprep.subr.mxu0 0.0
    %76 = vmatpush1.msra.mxu0 %v50
    %77 = vmatprep.subr.mxu0 0.0
    %78 = vmatpush1.msra.mxu0 %v51
    %79 = vmatprep.subr.mxu0 0.0
    %80 = vmatpush1.msra.mxu0 %v52
    %81 = vmatprep.subr.mxu0 0.0
    %82 = vmatpush1.msra.mxu0 %v53
    %83 = vmatprep.subr.mxu0 0.0
    %84 = vmatpush1.msra.mxu0 %v54
    %85 = vmatprep.subr.mxu0 0.0
    %86 = vmatpush1.msra.mxu0 %v55
    %87 = vmatprep.subr.mxu0 0.0
    %88 = vmatpush1.msra.mxu0 %v56
    %89 = vmatprep.subr.mxu0 0.0
    %90 = vmatpush1.msra.mxu0 %v57
    %91 = vmatprep.subr.mxu0 0.0
    %92 = vmatpush1.msra.mxu0 %v58
    %93 = vmatprep.subr.mxu0 0.0
    %94 = vmatpush1.msra.mxu0 %v59
    %95 = vmatprep.subr.mxu0 0.0
    %96 = vmatpush1.msra.mxu0 %v60
    %97 = vmatprep.subr.mxu0 0.0
    %98 = vmatpush1.msra.mxu0 %v61
    %99 = vmatprep.subr.mxu0 0.0
    %100 = vmatpush1.msra.mxu0 %v62
    %101 = vmatprep.subr.mxu0 0.0
    %102 = vmatpush1.msra.mxu0 %v63
    %103 = vmatprep.subr.mxu0 0.0
    %104 = vmatpush1.msra.mxu0 0.0
    %105 = vmatprep.subr.mxu0 0.0
    %106 = vmatpush1.msra.mxu0 0.0
    %107 = vmatprep.subr.mxu0 0.0
    %108 = vmatpush1.msra.mxu0 0.0
    %109 = vmatprep.subr.mxu0 0.0
    %110 = vmatpush1.msra.mxu0 0.0
    %111 = vmatprep.subr.mxu0 0.0
    %112 = vmatpush1.msra.mxu0 0.0
    %113 = vmatprep.subr.mxu0 0.0
    %114 = vmatpush1.msra.mxu0 0.0
    %115 = vmatprep.subr.mxu0 0.0
    %116 = vmatpush1.msra.mxu0 0.0
    %117 = vmatprep.subr.mxu0 0.0
    %118 = vmatpush1.msra.mxu0 0.0
    %119 = vmatprep.subr.mxu0 0.0
    %120 = vmatpush1.msra.mxu0 0.0
    %121 = vmatprep.subr.mxu0 0.0
    %122 = vmatpush1.msra.mxu0 0.0
    %123 = vmatprep.subr.mxu0 0.0
    %124 = vmatpush1.msra.mxu0 0.0
    %125 = vmatprep.subr.mxu0 0.0
    %126 = vmatpush1.msra.mxu0 0.0
    %127 = vmatprep.subr.mxu0 0.0
    %128 = vmatpush1.msra.mxu0 0.0
    %129 = vmatprep.subr.mxu0 0.0
    %130 = vmatpush1.msra.mxu0 0.0
    %131 = vmatprep.subr.mxu0 0.0
    %132 = vmatpush1.msra.mxu0 0.0
    %133 = vmatprep.subr.mxu0 0.0
    %134 = vmatpush1.msra.mxu0 0.0
    %135 = vmatprep.mubr.f32.mxu0 0.0
    %136 = vmatmul.mubr.f32.gmra.mrb[0].mxu0 %v46
    %v137 = vpop.f32.mrb[0].mxu0
    %v138 = vadd.f32 %v69, %v137
    %v139 = vpop.f32.mrb[0].mxu0
    %140 = vmatprep.mubr.f32.mxu0 0.0
    %141 = vmatmul.mubr.f32.gmra.mrb[0].mxu0 %v47
    %v142 = vpop.f32.mrb[0].mxu0
    %v143 = vadd.f32 %v69, %v142
    %v144 = vpop.f32.mrb[0].mxu0
    %145 = vdwg.mxu0
    %vm146 = vcmp.ge.f32.partialorder %v138, 0.0
    %vm147 = vcmp.ge.f32.partialorder %v143, 0.0
    %v148 = vmul.f32 %v138, 0.2
    %v149 = vmul.f32 %v143, 0.2
    %v150 = vsel %vm146, %v138, %v148
    %v151 = vsel %vm147, %v143, %v149
    %v152 = vld [vmem:[%s3] sm:$0x1]
    %153 = vmatprep.subr.mxu0 0.0
    %154 = vmatpush1.xpose.msra.mxu0 %v150
    %155 = vmatprep.subr.mxu0 0.0
    %156 = vmatpush1.xpose.msra.mxu0 %v151
    %157 = vmatprep.subr.mxu0 0.0
    %158 = vmatpush1.xpose.msra.mxu0 0.0
    %159 = vmatprep.subr.mxu0 0.0
    %160 = vmatpush1.xpose.msra.mxu0 0.0
    %161 = vmatprep.subr.mxu0 0.0
    %162 = vmatpush1.xpose.msra.mxu0 0.0
    %163 = vmatprep.subr.mxu0 0.0
    %164 = vmatpush1.xpose.msra.mxu0 0.0
    %165 = vmatprep.subr.mxu0 0.0
    %166 = vmatpush1.xpose.msra.mxu0 0.0
    %167 = vmatprep.subr.mxu0 0.0
    %168 = vmatpush1.xpose.msra.mxu0 0.0
    %169 = vmatprep.subr.mxu0 0.0
    %170 = vmatpush1.xpose.msra.mxu0 0.0
    %171 = vmatprep.subr.mxu0 0.0
    %172 = vmatpush1.xpose.msra.mxu0 0.0
    %173 = vmatprep.subr.mxu0 0.0
    %174 = vmatpush1.xpose.msra.mxu0 0.0
    %175 = vmatprep.subr.mxu0 0.0
    %176 = vmatpush1.xpose.msra.mxu0 0.0
    %177 = vmatprep.subr.mxu0 0.0
    %178 = vmatpush1.xpose.msra.mxu0 0.0
    %179 = vmatprep.subr.mxu0 0.0
    %180 = vmatpush1.xpose.msra.mxu0 0.0
    %181 = vmatprep.subr.mxu0 0.0
    %182 = vmatpush1.xpose.msra.mxu0 0.0
    %183 = vmatprep.subr.mxu0 0.0
    %184 = vmatpush1.xpose.msra.mxu0 0.0
    %185 = vmatprep.subr.mxu0 0.0
    %186 = vmatpush1.xpose.msra.mxu0 0.0
    %187 = vmatprep.subr.mxu0 0.0
    %188 = vmatpush1.xpose.msra.mxu0 0.0
    %189 = vmatprep.subr.mxu0 0.0
    %190 = vmatpush1.xpose.msra.mxu0 0.0
    %191 = vmatprep.subr.mxu0 0.0
    %192 = vmatpush1.xpose.msra.mxu0 0.0
    %193 = vmatprep.subr.mxu0 0.0
    %194 = vmatpush1.xpose.msra.mxu0 0.0
    %195 = vmatprep.subr.mxu0 0.0
    %196 = vmatpush1.xpose.msra.mxu0 0.0
    %197 = vmatprep.subr.mxu0 0.0
    %198 = vmatpush1.xpose.msra.mxu0 0.0
    %199 = vmatprep.subr.mxu0 0.0
    %200 = vmatpush1.xpose.msra.mxu0 0.0
    %201 = vmatprep.subr.mxu0 0.0
    %202 = vmatpush1.xpose.msra.mxu0 0.0
    %203 = vmatprep.subr.mxu0 0.0
    %204 = vmatpush1.xpose.msra.mxu0 0.0
    %205 = vmatprep.subr.mxu0 0.0
    %206 = vmatpush1.xpose.msra.mxu0 0.0
    %207 = vmatprep.subr.mxu0 0.0
    %208 = vmatpush1.xpose.msra.mxu0 0.0
    %209 = vmatprep.subr.mxu0 0.0
    %210 = vmatpush1.xpose.msra.mxu0 0.0
    %211 = vmatprep.subr.mxu0 0.0
    %212 = vmatpush1.xpose.msra.mxu0 0.0
    %213 = vmatprep.subr.mxu0 0.0
    %214 = vmatpush1.xpose.msra.mxu0 0.0
    %215 = vmatprep.subr.mxu0 0.0
    %216 = vmatpush1.xpose.msra.mxu0 0.0
    %217 = vmatprep.mubr.f32.mxu0 0.0
    %218 = vmatmul.mubr.f32.gmra.mrb[0].mxu0 %v152
    %v219 = vpop.f32.mrb[0].mxu0
    %v220 = vadd.f32 0.0, %v219
    %v221 = vpop.f32.mrb[0].mxu0
    %222 = vdwg.mxu0
    %vm223 = vcmask 122880
    %224 = vst.msk [vmem:[#allocation7] sm:$0x1] %vm223, %v220
    // Predicated region
    $region26: #{tpu_custom_call.1} parent=1 // pred_check
      _
    $region27: #{tpu_custom_call.1} parent=1 // pred_check_branch
      %226 = sbr.rel (0) target = $region29
    $region28: #{tpu_custom_call.1} parent=1 // pred_region
      %s228 = ssub.s32 16, 16
      %229 = vsyncadd [#allocation4], %s228
      %s231 = sshll.u32 [#allocation7], 4
      %s232 = int_to_ptr.vmem [resolvable:$true] %s231
      %234 = dma.vmem_to_hbm [thread:$0]  %s232, 16, %s4, [#allocation4]
    $region29: #{tpu_custom_call.1} parent=1 // pred_fallthru
      _
    // Predicated region
    $region30: #{tpu_custom_call.1} parent=1 // pred_check
      _
    $region31: #{tpu_custom_call.1} parent=1 // pred_check_branch
      %236 = sbr.rel (0) target = $region33
    $region32: #{tpu_custom_call.1} parent=1 // pred_region
      %237 = dma.done [#allocation4], 16
    $region33: #{tpu_custom_call.1} parent=1 // pred_fallthru
      _
    %238 = vsyncpa [#allocation3], 1
    %239 = vsyncpa [#allocation6], 1
    %240 = vsyncpa [#allocation4], 1

</llo_original>
